<compile_context>
chip_gen: v6e
topology: v6e:2x2x1
jax: 0.10.0
libtpu: 0.0.40
codegen_flags: <defaults>
</compile_context>

<pallas_src>
import jax
import jax.numpy as jnp
from jax.experimental import pallas as pl
from jax.experimental.pallas import tpu as pltpu

# Hyper-parameters from the module's __init__
BETA = 0.9
GAMMA = -0.1
EPSILON = 2.0


def _round_up(x, m):
    return ((x + m - 1) // m) * m


def _cdiv(a, b):
    return -(-a // b)


def _vmem_capacity_bytes():
    try:
        return int(pltpu.get_tpu_info().vmem_capacity_bytes)
    except Exception:
        return 64 * 1024 * 1024  # conservative default (v7x per-core VMEM)


# --------------------------------------------------------------- kernels ----
def _matmul_resident_kernel(x_ref, gw_ref, o_ref):
    # x_ref : (tm, C)   bf16 streamed row tile
    # gw_ref: (C, Dp)   bf16 gated weight, fetched once (Buffered(1)), resident
    # o_ref : (tm, Dp)  f32
    o_ref[...] = jnp.dot(
        x_ref[...], gw_ref[...], preferred_element_type=jnp.float32
    ).astype(o_ref.dtype)


def _matmul_ksplit_kernel(x_ref, gw_ref, o_ref):
    # K-tiled variant for weights too large to keep resident in VMEM.
    # The f32 output block is constant along k, so it stays resident and is
    # used directly as the accumulator (written back to HBM once per M tile).
    k = pl.program_id(1)
    p = jnp.dot(x_ref[...], gw_ref[...], preferred_element_type=jnp.float32)

    @pl.when(k == 0)
    def _():
        o_ref[...] = p

    @pl.when(k > 0)
    def _():
        o_ref[...] = o_ref[...] + p


# ----------------------------------------------------------- tile pickers ---
def _pick_tm_resident(M, C, D_pad, budget):
    """Row-tile for the resident-weight path (bf16 x, bf16 weight, f32 out)."""
    resident = 2 * C * D_pad * 2            # conservative: 2 bufs even w/ Buffered(1)
    per_row = 2 * C * 2 + 2 * D_pad * 4     # 2x bf16 x row + 2x f32 out row
    avail = max(budget - resident, 0)
    tm = avail // per_row
    tm = min(tm, 2048)
    # Keep >= 8 grid steps when M allows: 2-TC sharding on v7x + pipeline overlap.
    tm = min(tm, _round_up(_cdiv(M, 8), 128))
    tm = max(128, (tm // 128) * 128)        # multiple of 128 (MXU / bf16 packing)
    if tm >= M:
        tm = M                              # full-dim block: always layout-legal
    return tm


def _pick_tiles_ksplit(M, C, D_pad, budget):
    """(tm, tk) for the K-tiled path.  Requires C % 128 == 0."""
    tm_candidates = [t for t in (1024, 512, 256, 128) if t <= M] or [M]
    for tm in tm_candidates:
        out_bytes = 2 * tm * D_pad * 4
        for tk in range(min(C, 2048), 127, -128):
            if C % tk:
                continue
            if out_bytes + 2 * tm * tk * 2 + 2 * tk * D_pad * 2 <= budget:
                return tm, tk
    # TODO(synk): add an N(=D) grid axis (tn multiple of 256) when even
    # (128, 128) K tiles overflow VMEM because D_pad is huge.
    return (min(128, M), 128)


# ----------------------------------------------------------------- wrapper --
@jax.jit
def high_layers_forward(x, alpha, u, w_params):
    """x: (A, N, C); alpha: (1,); u, w_params: (C, D). Returns (A, N, D) f32."""
    A, N, C = x.shape
    C2, D = u.shape
    assert C == C2 and w_params.shape == (C, D)

    M = A * N
    D_pad = D if D % 128 == 0 else _round_up(D, 128)

    # --- gate: parameter-only, one XLA elementwise fusion (no Pallas launch,
    # no gated_w HBM round-trip through a second custom call).
    f32 = jnp.float32
    c = jnp.log(alpha.astype(f32).reshape(())) / BETA
    u32 = u.astype(f32)
    s = jax.nn.sigmoid(jnp.log(u32) - jnp.log(1.0 - u32) + c)
    z = jnp.clip(s * (EPSILON - GAMMA) + GAMMA, 0.0, 1.0)
    gated_w = (z * w_params.astype(f32)).astype(jnp.bfloat16)
    if D_pad != D:
        # Zero-padded columns -> exactly-zero output columns, sliced off below.
        gated_w = jnp.pad(gated_w, ((0, 0), (0, D_pad - D)))

    # bf16 activations: halves the x HBM stream and feeds the MXU natively.
    # (In a full model the producer should emit bf16 so this cast fuses away.)
    x2d = x.reshape(M, C).astype(jnp.bfloat16)

    # Generation-aware VMEM budget (v5e/v6e: 128 MiB, v7x: 64 MiB per core).
    vmem_cap = _vmem_capacity_bytes()
    budget = int(vmem_cap * 0.65)
    vmem_limit = int(vmem_cap * 0.90)

    resident_bytes = 2 * C * D_pad * 2          # weight, counted double-buffered
    per_row = 2 * C * 2 + 2 * D_pad * 4
    weight_fits = resident_bytes + 128 * per_row <= budget

    out_shape = jax.ShapeDtypeStruct((M, D_pad), jnp.float32)

    if weight_fits or C % 128 != 0:
        # TODO(synk): if a non-128-divisible C ever needs the K-split path,
        # zero-pad gated_w rows and x columns to a multiple of 128 first.
        tm = _pick_tm_resident(M, C, D_pad, budget)
        out = pl.pallas_call(
            _matmul_resident_kernel,
            out_shape=out_shape,
            grid=(_cdiv(M, tm),),
            in_specs=[
                pl.BlockSpec((tm, C), lambda i: (i, 0)),          # streamed x tile
                pl.BlockSpec((C, D_pad), lambda i: (0, 0),        # resident weight
                             pipeline_mode=pl.Buffered(1)),
            ],
            out_specs=pl.BlockSpec((tm, D_pad), lambda i: (i, 0)),
            compiler_params=pltpu.CompilerParams(
                dimension_semantics=("parallel",),
                vmem_limit_bytes=vmem_limit,
            ),
        )(x2d, gated_w)
    else:
        tm, tk = _pick_tiles_ksplit(M, C, D_pad, budget)
        out = pl.pallas_call(
            _matmul_ksplit_kernel,
            out_shape=out_shape,
            grid=(_cdiv(M, tm), C // tk),
            in_specs=[
                pl.BlockSpec((tm, tk), lambda i, k: (i, k)),
                pl.BlockSpec((tk, D_pad), lambda i, k: (k, 0)),
            ],
            out_specs=pl.BlockSpec((tm, D_pad), lambda i, k: (i, 0)),
            compiler_params=pltpu.CompilerParams(
                dimension_semantics=("parallel", "arbitrary"),
                vmem_limit_bytes=vmem_limit,
            ),
        )(x2d, gated_w)

    if D_pad != D:
        out = out[:, :D]        # one extra pass; skipped when D % 128 == 0
    return out.reshape(A, N, D)


if __name__ == "__main__":
    # Small shapes consistent with the forward: x (A, N, C), params (C, D)
    A, N, C, D = 2, 8, 32, 32

    key = jax.random.PRNGKey(0)
    k_x, k_alpha, k_u, k_w = jax.random.split(key, 4)

    x = jax.random.normal(k_x, (A, N, C), dtype=jnp.float32)

    # Parameter init matching the module's __init__:
    # alpha ~ U(0,1), u ~ U(0,1), w_params ~ xavier_normal (std = sqrt(2/(C+D)))
    alpha = jax.random.uniform(k_alpha, (1,), dtype=jnp.float32)
    u = jax.random.uniform(k_u, (C, D), dtype=jnp.float32)
    xavier_std = (2.0 / (C + D)) ** 0.5
    w_params = jax.random.normal(k_w, (C, D), dtype=jnp.float32) * xavier_std

    out = jax.block_until_ready(high_layers_forward(x, alpha, u, w_params))
    assert out.shape == (A, N, D)

    # Pure-JAX f32 reference mirroring the PyTorch forward exactly.
    s = jax.nn.sigmoid(jnp.log(u) - jnp.log(1.0 - u) + jnp.log(alpha[0]) / BETA)
    s_ = s * (EPSILON - GAMMA) + GAMMA
    z = (s_ > 0).astype(jnp.float32) * s_
    z = (z > 1).astype(jnp.float32) + (z <= 1).astype(jnp.float32) * z
    gw_f32 = z * w_params
    ref_f32 = jnp.einsum("anc,cd->and", x, gw_f32,
                         precision=jax.lax.Precision.HIGHEST)

    # Same-precision (bf16-operand, f32-accumulate) reference: tight check of
    # the kernel plumbing itself.
    ref_bf16 = jnp.einsum("anc,cd->and",
                          x.astype(jnp.bfloat16), gw_f32.astype(jnp.bfloat16),
                          preferred_element_type=jnp.float32)
    assert jnp.allclose(out, ref_bf16, atol=1e-3, rtol=1e-3), "kernel mismatch"

    # vs. the PyTorch-faithful f32 reference: bf16 MXU operands => ~1e-3
    # typical error at C=32 (documented tolerance).
    assert jnp.allclose(out, ref_f32, atol=3e-2, rtol=3e-2), "mismatch vs f32 ref"

    print("KERNEL_OK")
</pallas_src>

<mosaic_0001>
module attributes {stable_mosaic.version = 11 : i64} {
  func.func @_matmul_resident_kernel(%arg0: i32, %arg1: memref<16x32xbf16, #tpu.memory_space<vmem>>, %arg2: memref<32x128xbf16, #tpu.memory_space<vmem>>, %arg3: memref<16x128xf32, #tpu.memory_space<vmem>>) attributes {dimension_semantics = [#tpu.dimension_semantics<parallel>], iteration_bounds = array<i64: 1>, scalar_prefetch = 0 : i64, scratch_operands = 0 : i64, tpu.core_type = #tpu.core_type<tc>, window_params = [{transform_indices = @transform_0, window_bounds = array<i64: 16, 32>}, {pipeline_mode = #tpu.pipeline_mode<synchronous>, transform_indices = @transform_1, window_bounds = array<i64: 32, 128>}, {transform_indices = @transform_2, window_bounds = array<i64: 16, 128>}]} {
    %c0 = arith.constant 0 : index
    %c0_0 = arith.constant 0 : index
    %0 = vector.load %arg1[%c0, %c0_0] : memref<16x32xbf16, #tpu.memory_space<vmem>>, vector<16x32xbf16>
    %c0_1 = arith.constant 0 : index
    %c0_2 = arith.constant 0 : index
    %1 = vector.load %arg2[%c0_1, %c0_2] : memref<32x128xbf16, #tpu.memory_space<vmem>>, vector<32x128xbf16>
    %cst = arith.constant dense<0.000000e+00> : vector<16x128xf32>
    %2 = tpu.matmul %0, %1, %cst {dimension_numbers = #tpu.dot_dimension_numbers<[1], [0], [0], [1], [0, 0, 1, 1], [], []>} : vector<16x32xbf16>, vector<32x128xbf16>, vector<16x128xf32> -> vector<16x128xf32>
    %c0_3 = arith.constant 0 : index
    %c0_4 = arith.constant 0 : index
    %3 = vector.load %arg3[%c0_3, %c0_4] : memref<16x128xf32, #tpu.memory_space<vmem>>, vector<16x128xf32>
    tpu.vector_store %arg3[%c0_3, %c0_4], %2 {strides = array<i32>} : memref<16x128xf32, #tpu.memory_space<vmem>>, vector<16x128xf32>,
    return
  }
  func.func @transform_0(%arg0: i32) -> (i32, i32) {
    %c0_i32 = arith.constant 0 : i32
    %c0_i32_0 = arith.constant 0 : i32
    return %arg0, %c0_i32 : i32, i32
  }
  func.func @transform_1(%arg0: i32) -> (i32, i32) {
    %c0_i32 = arith.constant 0 : i32
    %c0_i32_0 = arith.constant 0 : i32
    %c0_i32_1 = arith.constant 0 : i32
    return %c0_i32, %c0_i32_0 : i32, i32
  }
  func.func @transform_2(%arg0: i32) -> (i32, i32) {
    %c0_i32 = arith.constant 0 : i32
    %c0_i32_0 = arith.constant 0 : i32
    return %arg0, %c0_i32 : i32, i32
  }
}

</mosaic_0001>

<llo_original>
// kernel: high_layers_forward.1
$region0: #{high_layers_forward.1}
  #allocation0 [shape = 'u32[]', space=smem, size = 0x4, offset = 0x4, fixed_abs, tag = 'smem constant byte address 0x4 - core index']
  #allocation1 [shape = 'u32[144,128]{1,0:T(1,128)}', space=vmem, size = 0x12000, scoped, tag = 'internal scratch']
  %s0 = inlined_call_operand.vmem [shape: bf16[16,32], index: 0, kind: input, shape index: {}]
  %s1 = inlined_call_operand.vmem [shape: bf16[32,128], index: 1, kind: input, shape index: {}]
  %s2 = inlined_call_operand.vmem [shape: f32[16,128], index: 2, kind: output, shape index: {}]
  %s3 = sld [smem:[#allocation0]]
  $region18: #{high_layers_forward.1} parent=0
    _
  %s5 = ssub.s32 1, %s3
  %s6 = scalar_select 0, %s5, %s3
  // Predicated region
  $region2: #{high_layers_forward.1} parent=0 // pred_check
    _
  $region3: #{high_layers_forward.1} parent=0 // pred_check_branch
    %8 = sbr.rel (0) target = $region5
  $region4: #{high_layers_forward.1} parent=0 // pred_region
    _
  $region5: #{high_layers_forward.1} parent=0 // pred_fallthru
    _
  // Predicated region
  $region6: #{high_layers_forward.1} parent=0 // pred_check
    _
  $region7: #{high_layers_forward.1} parent=0 // pred_check_branch
    %10 = sbr.rel (0) target = $region9
  $region8: #{high_layers_forward.1} parent=0 // pred_region
    _
  $region9: #{high_layers_forward.1} parent=0 // pred_fallthru
    _
  %v12 = vld [vmem:[%s0] sm:$0xf]
  %v13 = vld [vmem:[%s0 + $0x4] sm:$0xf]
  %v14 = vld [vmem:[%s1] sm:$0xf]
  %v15 = vld [vmem:[%s1 + $0x4] sm:$0xf]
  %v16 = vld [vmem:[%s1 + $0x8] sm:$0xf]
  %v17 = vld [vmem:[%s1 + $0xc] sm:$0xf]
  %v20 = vunpack.c.l.b16 %v12
  %v21 = vunpack.c.l.b16 %v13
  %v22 = vpack.c.b16 %v21, %v20
  %v27 = vunpack.c.l.b16 %v14
  %v28 = vunpack.c.l.b16 %v15
  %v29 = vunpack.c.l.b16 %v16
  %v30 = vunpack.c.l.b16 %v17
  %v31 = vpack.c.b16 %v28, %v27
  %v32 = vpack.c.b16 %v30, %v29
  %vm35 = vcmask 261120
  %v37 = vsel %vm35, %v22, 0
  %39 = vmatprep.subr.bf16.mxu0 0
  %40 = vmatpush1.bf16.msra.mxu0 0
  %41 = vmatprep.subr.bf16.mxu0 0
  %42 = vmatpush1.bf16.msra.mxu0 0
  %43 = vmatprep.subr.bf16.mxu0 0
  %44 = vmatpush1.bf16.msra.mxu0 0
  %45 = vmatprep.subr.bf16.mxu0 0
  %46 = vmatpush1.bf16.msra.mxu0 0
  %47 = vmatprep.subr.bf16.mxu0 0
  %48 = vmatpush1.bf16.msra.mxu0 0
  %49 = vmatprep.subr.bf16.mxu0 0
  %50 = vmatpush1.bf16.msra.mxu0 0
  %51 = vmatprep.subr.bf16.mxu0 0
  %52 = vmatpush1.bf16.msra.mxu0 %v32
  %53 = vmatprep.subr.bf16.mxu0 0
  %54 = vmatpush1.bf16.msra.mxu0 %v31
  %55 = vmatprep.subr.bf16.mxu0 0
  %56 = vmatpush2.bf16.msra.mxu0 0
  %57 = vmatprep.subr.bf16.mxu0 0
  %58 = vmatpush2.bf16.msra.mxu0 0
  %59 = vmatprep.subr.bf16.mxu0 0
  %60 = vmatpush2.bf16.msra.mxu0 0
  %61 = vmatprep.subr.bf16.mxu0 0
  %62 = vmatpush2.bf16.msra.mxu0 0
  %63 = vmatprep.subr.bf16.mxu0 0
  %64 = vmatpush2.bf16.msra.mxu0 0
  %65 = vmatprep.subr.bf16.mxu0 0
  %66 = vmatpush2.bf16.msra.mxu0 0
  %67 = vmatprep.subr.bf16.mxu0 0
  %68 = vmatpush2.bf16.msra.mxu0 0
  %69 = vmatprep.subr.bf16.mxu0 0
  %70 = vmatpush2.bf16.msra.mxu0 0
  %71 = vmatprep.mubr.bf16.mxu0 0
  %72 = vmatmul.mubr.bf16.gmra.mxu0 %v37
  %v73 = vpop.f32.mrf.mxu0
  %v74 = vadd.f32 0.0, %v73
  %v75 = vpop.f32.mrf.mxu0
  %v76 = vpop.f32.mrf.mxu0
  %v77 = vadd.f32 0.0, %v76
  %v78 = vpop.f32.mrf.mxu0
  %79 = vdwg.mxu0
  %80 = vst [vmem:[%s2] sm:$0xff] %v74
  %81 = vst [vmem:[%s2 + $0x8] sm:$0xff] %v77
  // Predicated region
  $region10: #{high_layers_forward.1} parent=0 // pred_check
    _
  $region11: #{high_layers_forward.1} parent=0 // pred_check_branch
    %83 = sbr.rel (0) target = $region13
  $region12: #{high_layers_forward.1} parent=0 // pred_region
    _
  $region13: #{high_layers_forward.1} parent=0 // pred_fallthru
    _
  // Predicated region
  $region14: #{high_layers_forward.1} parent=0 // pred_check
    _
  $region15: #{high_layers_forward.1} parent=0 // pred_check_branch
    %85 = sbr.rel (0) target = $region17
  $region16: #{high_layers_forward.1} parent=0 // pred_region
    _
  $region17: #{high_layers_forward.1} parent=0 // pred_fallthru
    _

</llo_original>
